<compile_context>
chip_gen: v5e
topology: v5e:2x2
jax: 0.10.0
libtpu: 0.0.40
codegen_flags: <defaults>
</compile_context>

<pallas_src>
import functools
import numpy as np
import jax
import jax.numpy as jnp
from jax.experimental import pallas as pl
from jax.experimental.pallas import tpu as pltpu

EPS = 1e-5            # nn.BatchNorm2d default eps
MID = 64              # bottleneck width fixed by the module (conv1/conv2 out_channels)
CPAD = 8              # input/output channels padded to one f32 sublane tile
STATS_LANES = 128     # per-tile stats blocks are one lane-tile wide
TARGET_TILE_LANES = 256   # small so the toy test exercises >1 tile; raise toward 2K-8K lanes
                          # for real extents (re-derive for v7x's 64 MiB physical VMEM).
VMEM_LIMIT = 32 * 1024 * 1024


# ----------------------------------------------------------------------------- kernels

def _write_stats(stats_ref, v):
    """Pack per-channel [sum, sum_sq] of v into lanes 0/1 of a (rows, 128) block."""
    s = jnp.sum(v, axis=1, keepdims=True)
    ss = jnp.sum(v * v, axis=1, keepdims=True)
    lane = jax.lax.broadcasted_iota(jnp.int32, stats_ref.shape, 1)
    stats_ref[...] = jnp.where(lane == 0, s, jnp.where(lane == 1, ss, 0.0))


def stats_kernel(x_ref, stats_ref):
    """K0: per-tile channel stats of x (feeds bn1 scale/shift)."""
    _write_stats(stats_ref, x_ref[...])


def conv1_kernel(C_real, x_ref, s1_ref, t1_ref, w1_ref, z1_ref, stats_ref):
    """K1: z1 = conv1(relu(bn1(x))) (1x1 conv, bias absorbed by the next BN)."""
    a = jnp.maximum(x_ref[...] * s1_ref[...] + t1_ref[...], 0.0)       # (CPAD, TP)
    w1 = w1_ref[...]                                                    # (MID, CPAD)
    if C_real >= 16:
        # Real ResNet widths: contract on the MXU (bf16 operands, f32 accumulate).
        z1 = jnp.dot(w1.astype(jnp.bfloat16), a.astype(jnp.bfloat16),
                     preferred_element_type=jnp.float32)
    else:
        # Tiny C: C broadcast FMAs on the VPU (an MXU K=C matmul would pad K to 128/256).
        z1 = w1[:, 0:1] * a[0:1, :]
        for c in range(1, C_real):
            z1 = z1 + w1[:, c:c + 1] * a[c:c + 1, :]                    # (MID, TP)
    z1_ref[...] = z1
    _write_stats(stats_ref, z1)    # pre-bias stats feed the first bn2 scale/shift


def conv2_kernel(H, W, z1_ref, s2_ref, t2_ref, w2_ref, z2_ref, stats_ref):
    """K2: z2 = conv2(relu(bn2(z1))), 3x3 pad=1, as 3 dh-grouped bf16 K=192 matmuls."""
    TP = z1_ref.shape[1]
    b = jnp.maximum(z1_ref[...] * s2_ref[...] + t2_ref[...], 0.0)       # (MID, TP) f32

    lane = jax.lax.broadcasted_iota(jnp.int32, (1, TP), 1)
    wi = lane % W
    hi = (lane // W) % H
    h_ok = {dh: (hi + dh >= 0) & (hi + dh < H) for dh in (-1, 0, 1)}
    w_ok = {dw: (wi + dw >= 0) & (wi + dw < W) for dw in (-1, 0, 1)}

    acc = None
    for g, dh in enumerate((-1, 0, 1)):
        taps = []
        for dw in (-1, 0, 1):
            off = dh * W + dw
            tap = b if off == 0 else pltpu.roll(b, shift=(-off) % TP, axis=1)
            if dh == 0 and dw == 0:
                mask = None
            elif dh == 0:
                mask = w_ok[dw]
            elif dw == 0:
                mask = h_ok[dh]
            else:
                mask = h_ok[dh] & w_ok[dw]
            if mask is not None:
                tap = jnp.where(mask, tap, 0.0)          # zero the 1-px border (padding=1)
            taps.append(tap.astype(jnp.bfloat16))
        group = jnp.concatenate(taps, axis=0)            # (3*MID, TP) bf16, per-tile im2col
        part = jnp.dot(w2_ref[g], group, preferred_element_type=jnp.float32)   # K = 192
        acc = part if acc is None else acc + part
    z2_ref[...] = acc
    _write_stats(stats_ref, acc)   # pre-bias stats feed the second bn2 scale/shift


def conv3_kernel(z2_ref, x_ref, s3_ref, t3_ref, w3_ref, c3b_ref, out_ref):
    """K3: out = x + conv3(relu(bn2(z2)))."""
    c = jnp.maximum(z2_ref[...] * s3_ref[...] + t3_ref[...], 0.0)       # (MID, TP)
    y3 = jnp.dot(w3_ref[...], c.astype(jnp.bfloat16),
                 preferred_element_type=jnp.float32) + c3b_ref[...]     # (CPAD, TP)
    out_ref[...] = x_ref[...] + y3                                      # lane-dense residual


# ----------------------------------------------------------------------------- wrapper

def _pick_imgs_per_tile(N, HW):
    """Whole-image tiles whose lane extent is a multiple of 128 (or full P fallback)."""
    valid = [k for k in range(1, N + 1) if N % k == 0 and (k * HW) % 128 == 0]
    if not valid:
        return N                      # single full-extent tile (block == full dim is legal)
    for k in valid:
        if k * HW >= TARGET_TILE_LANES:
            return k
    return valid[-1]


def _bn_scale_shift(stats, num_tiles, count, gamma, beta):
    """Combine per-tile [sum, sum_sq] partials into per-channel BN (scale, shift)."""
    p = stats.reshape(num_tiles, -1, STATS_LANES)
    total = jnp.sum(p, axis=0)                              # (rows, 128)
    mean = total[:, 0] / count
    var = jnp.maximum(total[:, 1] / count - mean * mean, 0.0)   # guard f32 cancellation
    scale = gamma * jax.lax.rsqrt(var + EPS)
    shift = beta - mean * scale
    return scale[:, None], shift[:, None]                   # (rows, 1) f32 columns


def _prep_params(C, params):
    """One-time transform of module-layout params into the kernels' layouts."""
    g1, b1, g2, b2, w1, c1b, w2, c2b, w3, c3b = params
    g1p = jnp.zeros((CPAD,), jnp.float32).at[:C].set(g1.reshape(-1))
    b1p = jnp.zeros((CPAD,), jnp.float32).at[:C].set(b1.reshape(-1))
    g2f = g2.reshape(-1)
    b2f = b2.reshape(-1)
    # conv1: (C, MID) -> (MID, CPAD), zero-padded input channels
    w1p = jnp.zeros((MID, CPAD), jnp.float32).at[:, :C].set(w1.T)
    # conv2: (9, MIDin, MIDout) -> (3, MIDout, 3*MIDin), grouped by dh, bf16 MXU operand
    w2g = (jnp.transpose(w2, (2, 0, 1)).reshape(MID, 3, 3 * MID)
           .transpose(1, 0, 2).astype(jnp.bfloat16))
    # conv3: (MID, C) -> (CPAD, MID) bf16 (zero-padded out channels); bias (CPAD, 1) f32
    w3p = jnp.zeros((CPAD, MID), jnp.float32).at[:C, :].set(w3.T).astype(jnp.bfloat16)
    c3bp = jnp.zeros((CPAD, 1), jnp.float32).at[:C, :].set(c3b.T)
    # c1b / c2b are absorbed exactly by the training-mode BatchNorm that follows each conv
    # (bn(v + b) == bn(v)); the kernels intentionally never apply them.
    return g1p, b1p, g2f, b2f, w1p, w2g, w3p, c3bp


def bottleneck_forward(x_nchw, params):
    N, C, H, W = x_nchw.shape
    P = N * H * W
    HW = H * W
    imgs = _pick_imgs_per_tile(N, HW)
    TP = imgs * HW
    num_tiles = P // TP

    g1p, b1p, g2f, b2f, w1p, w2g, w3p, c3bp = _prep_params(C, params)

    # channel-major, lane-dense layout padded to 8 sublanes: (CPAD, N*H*W)
    x_cp = jnp.transpose(x_nchw, (1, 0, 2, 3)).reshape(C, P).astype(jnp.float32)
    x_pad = jnp.zeros((CPAD, P), jnp.float32).at[:C, :].set(x_cp)

    cparams = pltpu.CompilerParams(dimension_semantics=("parallel",),
                                   vmem_limit_bytes=VMEM_LIMIT)

    def tile_spec(rows):            # streamed activation tiles
        return pl.BlockSpec((rows, TP), lambda i: (0, i))

    def const_spec(shape):          # constant block index -> DMA'd once, VMEM-resident
        nd = len(shape)
        return pl.BlockSpec(shape, lambda i, _nd=nd: (0,) * _nd)

    def stats_spec(rows):           # independent per-tile partial-stats blocks
        return pl.BlockSpec((rows, STATS_LANES), lambda i: (i, 0))

    def stats_shape(rows):
        return jax.ShapeDtypeStruct((num_tiles * rows, STATS_LANES), jnp.float32)

    # --- pass 0: per-tile channel stats of x -> bn1 scale/shift -----------------------
    xstats = pl.pallas_call(
        stats_kernel,
        grid=(num_tiles,),
        in_specs=[tile_spec(CPAD)],
        out_specs=stats_spec(CPAD),
        out_shape=stats_shape(CPAD),
        compiler_params=cparams,
    )(x_pad)
    s1, t1 = _bn_scale_shift(xstats, num_tiles, P, g1p, b1p)

    # --- pass 1: z1 = conv1(relu(bn1(x))) + stats of z1 --------------------------------
    z1, z1stats = pl.pallas_call(
        functools.partial(conv1_kernel, C),
        grid=(num_tiles,),
        in_specs=[tile_spec(CPAD),
                  const_spec((CPAD, 1)), const_spec((CPAD, 1)),
                  const_spec((MID, CPAD))],
        out_specs=(tile_spec(MID), stats_spec(MID)),
        out_shape=(jax.ShapeDtypeStruct((MID, P), jnp.float32), stats_shape(MID)),
        compiler_params=cparams,
    )(x_pad, s1, t1, w1p)
    s2, t2 = _bn_scale_shift(z1stats, num_tiles, P, g2f, b2f)

    # --- pass 2: z2 = conv2(relu(bn2(z1))) + stats of z2 -------------------------------
    z2, z2stats = pl.pallas_call(
        functools.partial(conv2_kernel, H, W),
        grid=(num_tiles,),
        in_specs=[tile_spec(MID),
                  const_spec((MID, 1)), const_spec((MID, 1)),
                  const_spec((3, MID, 3 * MID))],
        out_specs=(tile_spec(MID), stats_spec(MID)),
        out_shape=(jax.ShapeDtypeStruct((MID, P), jnp.float32), stats_shape(MID)),
        compiler_params=cparams,
    )(z1, s2, t2, w2g)
    s3, t3 = _bn_scale_shift(z2stats, num_tiles, P, g2f, b2f)

    # --- pass 3: out = x + conv3(relu(bn2(z2))) -----------------------------------------
    out_pad = pl.pallas_call(
        conv3_kernel,
        grid=(num_tiles,),
        in_specs=[tile_spec(MID), tile_spec(CPAD),
                  const_spec((MID, 1)), const_spec((MID, 1)),
                  const_spec((CPAD, MID)), const_spec((CPAD, 1))],
        out_specs=tile_spec(CPAD),
        out_shape=jax.ShapeDtypeStruct((CPAD, P), jnp.float32),
        compiler_params=cparams,
    )(z2, x_pad, s3, t3, w3p, c3bp)

    out_cp = out_pad[:C, :]
    return jnp.transpose(out_cp.reshape(C, N, H, W), (1, 0, 2, 3))   # back to NCHW


# ----------------------------------------------------------------------------- test harness

def init_params(channels, key):
    """Deterministic parameter init (shapes match the nn.Module __init__)."""
    ks = jax.random.split(key, 6)
    g1 = jnp.ones((1, channels), jnp.float32)    # bn1.weight
    b1 = jnp.zeros((1, channels), jnp.float32)   # bn1.bias
    g2 = jnp.ones((1, MID), jnp.float32)         # bn2.weight
    b2 = jnp.zeros((1, MID), jnp.float32)        # bn2.bias
    # conv1: (64, channels, 1, 1) -> (channels, 64)
    w1 = jax.random.normal(ks[0], (channels, MID), jnp.float32) * (2.0 / channels) ** 0.5
    c1b = jax.random.normal(ks[1], (1, MID), jnp.float32) * 0.05
    # conv2: (64, 64, 3, 3) -> (9, 64_in, 64_out), tap-major
    w2 = jax.random.normal(ks[2], (9, MID, MID), jnp.float32) * (2.0 / (9 * MID)) ** 0.5
    c2b = jax.random.normal(ks[3], (1, MID), jnp.float32) * 0.05
    # conv3: (channels, 64, 1, 1) -> (64, channels)
    w3 = jax.random.normal(ks[4], (MID, channels), jnp.float32) * (2.0 / MID) ** 0.5
    c3b = jax.random.normal(ks[5], (1, channels), jnp.float32) * 0.05
    return (g1, b1, g2, b2, w1, c1b, w2, c2b, w3, c3b)


def _bn_relu_nhwc(v, gamma, beta):
    mean = jnp.mean(v, axis=(0, 1, 2), keepdims=True)
    var = jnp.mean((v - mean) ** 2, axis=(0, 1, 2), keepdims=True)
    return jnp.maximum((v - mean) / jnp.sqrt(var + EPS) * gamma + beta, 0.0)


def reference_forward(x_nchw, params):
    """Pure-JAX f32 reference with the module's exact math (biases included)."""
    g1, b1, g2, b2, w1, c1b, w2, c2b, w3, c3b = params
    x = jnp.transpose(x_nchw, (0, 2, 3, 1)).astype(jnp.float32)
    N, H, W, C = x.shape
    hi = jax.lax.Precision.HIGHEST
    a = _bn_relu_nhwc(x, g1, b1)
    y1 = jnp.einsum('nhwc,cd->nhwd', a, w1, precision=hi) + c1b
    b = _bn_relu_nhwc(y1, g2, b2)
    bp = jnp.pad(b, ((0, 0), (1, 1), (1, 1), (0, 0)))
    acc = jnp.zeros_like(y1) + c2b
    for kh in range(3):
        for kw in range(3):
            acc = acc + jnp.einsum('nhwc,cd->nhwd',
                                   bp[:, kh:kh + H, kw:kw + W, :], w2[kh * 3 + kw],
                                   precision=hi)
    c = _bn_relu_nhwc(acc, g2, b2)
    y3 = jnp.einsum('nhwc,cd->nhwd', c, w3, precision=hi) + c3b
    return jnp.transpose(x + y3, (0, 3, 1, 2))


if __name__ == "__main__":
    key = jax.random.PRNGKey(0)
    kx, kp = jax.random.split(key)

    N, C, H, W = 2, 4, 16, 16              # small NCHW input, like the PyTorch module
    x = jax.random.normal(kx, (N, C, H, W), jnp.float32)
    params = init_params(C, kp)

    out = jax.block_until_ready(bottleneck_forward(x, params))
    ref = jax.block_until_ready(reference_forward(x, params))

    assert out.shape == (N, C, H, W) and out.dtype == jnp.float32
    # bf16 MXU operands (f32 accumulate) vs the f32 HIGHEST-precision reference.
    np.testing.assert_allclose(np.asarray(out), np.asarray(ref), rtol=2e-2, atol=2e-2)
    print("KERNEL_OK")
</pallas_src>

<mosaic_0001>
module attributes {stable_mosaic.version = 11 : i64} {
  func.func @stats_kernel(%arg0: i32, %arg1: memref<8x256xf32, #tpu.memory_space<vmem>>, %arg2: memref<8x128xf32, #tpu.memory_space<vmem>>) attributes {dimension_semantics = [#tpu.dimension_semantics<parallel>], iteration_bounds = array<i64: 2>, scalar_prefetch = 0 : i64, scratch_operands = 0 : i64, tpu.core_type = #tpu.core_type<tc>, window_params = [{transform_indices = @transform_0, window_bounds = array<i64: 8, 256>}, {transform_indices = @transform_1, window_bounds = array<i64: 8, 128>}]} {
    %c0 = arith.constant 0 : index
    %c0_0 = arith.constant 0 : index
    %0 = vector.load %arg1[%c0, %c0_0] : memref<8x256xf32, #tpu.memory_space<vmem>>, vector<8x256xf32>
    %cst = arith.constant dense<0.000000e+00> : vector<8xf32>
    %1 = vector.multi_reduction <add>, %0, %cst [1] : vector<8x256xf32> to vector<8xf32>
    %2 = vector.shape_cast %1 : vector<8xf32> to vector<8x1xf32>
    %3 = arith.mulf %0, %0 : vector<8x256xf32>
    %cst_1 = arith.constant dense<0.000000e+00> : vector<8xf32>
    %4 = vector.multi_reduction <add>, %3, %cst_1 [1] : vector<8x256xf32> to vector<8xf32>
    %5 = vector.shape_cast %4 : vector<8xf32> to vector<8x1xf32>
    %6 = tpu.iota {dimensions = array<i32: 1>} : vector<8x128xi32>
    %c0_i32 = arith.constant 0 : i32
    %7 = vector.broadcast %c0_i32 : i32 to vector<8x128xi32>
    %8 = arith.cmpi eq, %6, %7 : vector<8x128xi32>
    %c1_i32 = arith.constant 1 : i32
    %9 = vector.broadcast %c1_i32 : i32 to vector<8x128xi32>
    %10 = arith.cmpi eq, %6, %9 : vector<8x128xi32>
    %cst_2 = arith.constant 0.000000e+00 : f32
    %11 = vector.shape_cast %5 : vector<8x1xf32> to vector<8x1xf32>
    %12 = vector.broadcast %11 : vector<8x1xf32> to vector<8x128xf32>
    %13 = vector.broadcast %cst_2 : f32 to vector<8x128xf32>
    %14 = arith.select %10, %12, %13 : vector<8x128xi1>, vector<8x128xf32>
    %15 = vector.shape_cast %2 : vector<8x1xf32> to vector<8x1xf32>
    %16 = vector.broadcast %15 : vector<8x1xf32> to vector<8x128xf32>
    %17 = arith.select %8, %16, %14 : vector<8x128xi1>, vector<8x128xf32>
    %c0_3 = arith.constant 0 : index
    %c0_4 = arith.constant 0 : index
    %18 = vector.load %arg2[%c0_3, %c0_4] : memref<8x128xf32, #tpu.memory_space<vmem>>, vector<8x128xf32>
    tpu.vector_store %arg2[%c0_3, %c0_4], %17 {strides = array<i32>} : memref<8x128xf32, #tpu.memory_space<vmem>>, vector<8x128xf32>,
    return
  }
  func.func @transform_0(%arg0: i32) -> (i32, i32) {
    %c0_i32 = arith.constant 0 : i32
    %c0_i32_0 = arith.constant 0 : i32
    return %c0_i32, %arg0 : i32, i32
  }
  func.func @transform_1(%arg0: i32) -> (i32, i32) {
    %c0_i32 = arith.constant 0 : i32
    %c0_i32_0 = arith.constant 0 : i32
    return %arg0, %c0_i32 : i32, i32
  }
}

</mosaic_0001>

<llo_original>
// kernel: tpu_custom_call.1
$region0: #{tpu_custom_call.1}
  #allocation0 [shape = 'u32[]', space=smem, size = 0x4, offset = 0x4, fixed_abs, tag = 'smem constant byte address 0x4 - core index']
  #allocation1 [shape = 'u32[72,128]{1,0:T(1,128)}', space=vmem, size = 0x9000, scoped, tag = 'internal scratch']
  %s0 = inlined_call_operand.hbm [shape: f32[8,512], index: 0, kind: input, shape index: {}]
  %s1 = inlined_call_operand.hbm [shape: f32[16,128], index: 1, kind: output, shape index: {}]
  %s2 = sld [smem:[#allocation0]]
  $region41: #{tpu_custom_call.1} parent=0
    _
  %s4 = ssub.s32 1, %s2
  %s5 = scalar_select 0, %s4, %s2
  $region1: #{tpu_custom_call.1} parent=0
    #allocation2 [shape = 'u8[16384]{0}', space=vmem, size = 0x4000, scoped, tag = 'input window, operand 0']
    #allocation3 [shape = 's32[2]{0}', space=sflag, size = 0x8, scoped, tag = 'scoped memory for tpu_custom_call.1']
    #allocation4 [shape = 's32[2]{0}', space=sflag, size = 0x8, scoped, tag = 'scoped memory for tpu_custom_call.1']
    #allocation5 [shape = 'u8[8192]{0}', space=vmem, size = 0x2000, scoped, tag = 'output window, operand 0']
    %6 = vsyncpa [#allocation3], 0
    %s7 = scalar_lea.sflag [#allocation3], 1
    %8 = vsyncpa %s7, 0
    %9 = vsyncpa [#allocation4], 0
    %s10 = scalar_lea.sflag [#allocation4], 1
    %11 = vsyncpa %s10, 0
    loop: start=0, step=1, limit=4
    $region2: #{tpu_custom_call.1} parent=1 // loop_pre_header
      _
    $region3: #{tpu_custom_call.1} parent=1 // loop_header
      %s13 = sphi 0, %s17
      %p14 = scmp.ge.s32.totalorder %s13, 4
      %s23 = sphi 0, %s25
      %s26 = sphi 0, %s23
      %s27 = sphi 0, %s26
      %s43 = sphi 0, %s27
      %s49 = sphi 0, %s51
      %s52 = sphi 0, %s49
      %s53 = sphi 0, %s52
      %s69 = sphi 0, %s53
    $region4: #{tpu_custom_call.1} parent=1 // loop_header_branch
      %16 = sbr.rel (%p14) target = $region8
    $region5: #{tpu_custom_call.1} parent=1 // loop_body
      %s18 = ssub.s32 %s13, 1
      %s19 = ssub.s32 %s13, 2
      %s20 = sadd.s32 %s13, 1
      %s21 = ssub.s32 %s13, %s20
      %p22 = scmp.eq.s32.totalorder %s21, 0
      %s24 = sadd.s32 %s23, 1
      %s25 = scalar_select %p22, %s23, %s24
      %p28 = pneg %p22
      %p29 = scmp.eq.s32.totalorder %s13, 1
      %p30 = por %p28, %p29
      %p31 = scmp.ne.s32.totalorder %s23, %s26
      %p32 = scmp.eq.s32.totalorder %s13, 0
      %p33 = por %p31, %p32
      %p34 = scmp.ne.s32.totalorder %s23, %s26
      %p35 = scmp.eq.s32.totalorder %s18, 1
      %p36 = por %p34, %p35
      %p37 = scmp.ne.s32.totalorder %s26, %s27
      %p38 = scmp.eq.s32.totalorder %s18, 0
      %p39 = por %p37, %p38
      %p40 = scmp.ne.s32.totalorder %s26, %s27
      %p41 = scmp.eq.s32.totalorder %s19, 1
      %p42 = por %p40, %p41
      %p44 = scmp.ne.s32.totalorder %s27, %s43
      %p45 = scmp.eq.s32.totalorder %s19, 0
      %p46 = por %p44, %p45
      %s47 = ssub.s32 %s13, %s20
      %p48 = scmp.eq.s32.totalorder %s47, 0
      %s50 = sadd.s32 %s49, 1
      %s51 = scalar_select %p48, %s49, %s50
      %p54 = pneg %p48
      %p55 = scmp.eq.s32.totalorder %s13, 1
      %p56 = por %p54, %p55
      %p57 = scmp.ne.s32.totalorder %s49, %s52
      %p58 = scmp.eq.s32.totalorder %s13, 0
      %p59 = por %p57, %p58
      %p60 = scmp.ne.s32.totalorder %s49, %s52
      %p61 = scmp.eq.s32.totalorder %s18, 1
      %p62 = por %p60, %p61
      %p63 = scmp.ne.s32.totalorder %s52, %s53
      %p64 = scmp.eq.s32.totalorder %s18, 0
      %p65 = por %p63, %p64
      %p66 = scmp.ne.s32.totalorder %s52, %s53
      %p67 = scmp.eq.s32.totalorder %s19, 1
      %p68 = por %p66, %p67
      %p70 = scmp.ne.s32.totalorder %s53, %s69
      %p71 = scmp.eq.s32.totalorder %s19, 0
      %p72 = por %p70, %p71
      %p73 = scmp.le.s32.totalorder 1, %s13
      %p74 = scmp.lt.s32.totalorder %s13, 3
      %p75 = pnand %p73, %p74
      %p76 = pneg %p75
      // Predicated region
      $region9: #{tpu_custom_call.1} parent=5 // pred_check
        _
      $region10: #{tpu_custom_call.1} parent=5 // pred_check_branch
        %78 = sbr.rel (%p75) target = $region12
      $region11: #{tpu_custom_call.1} parent=5 // pred_region
        %s79 = ssub.s32 %s13, 1
      $region12: #{tpu_custom_call.1} parent=5 // pred_fallthru
        _
      %p80 = scmp.lt.s32.totalorder %s13, 2
      // Predicated region
      $region13: #{tpu_custom_call.1} parent=5 // pred_check
        %p81 = pneg %p80
      $region14: #{tpu_custom_call.1} parent=5 // pred_check_branch
        %83 = sbr.rel (%p81) target = $region16
      $region15: #{tpu_custom_call.1} parent=5 // pred_region
        // Predicated region
        $region17: #{tpu_custom_call.1} parent=15 // pred_check
          %p84 = pneg %p33
        $region18: #{tpu_custom_call.1} parent=15 // pred_check_branch
          %86 = sbr.rel (%p84) target = $region20
        $region19: #{tpu_custom_call.1} parent=15 // pred_region
          %s87 = sand.u32 %s23, 1
          %s88 = scalar_lea.sflag [#allocation3], %s87
          %s89 = sand.u32 %s23, 1
          %s90 = smul.addr %s89, 16
          %s91 = scalar_lea.vmem [#allocation2], %s90
          %s92 = smul.u32 2, %s13
          %94 = vsyncadd %s88, 0
          %s95 = smul.addr %s92, 8
          %s96 = scalar_lea.hbm %s0, %s95
          %s98 = sshll.u32 %s96, 4
          %s99 = int_to_ptr.hbm [resolvable:$true] %s98
          %s100 = sshll.u32 %s91, 4
          %s101 = int_to_ptr.vmem [resolvable:$true] %s100
          %103 = dma.hbm_to_vmem [thread:$0]  %s99, 256, %s101, %s88
        $region20: #{tpu_custom_call.1} parent=15 // pred_fallthru
          _
      $region16: #{tpu_custom_call.1} parent=5 // pred_fallthru
        _
      %p104 = scmp.le.s32.totalorder 1, %s13
      %p105 = scmp.lt.s32.totalorder %s13, 3
      %p106 = pnand %p104, %p105
      %p107 = pneg %p106
      // Predicated region
      $region21: #{tpu_custom_call.1} parent=5 // pred_check
        _
      $region22: #{tpu_custom_call.1} parent=5 // pred_check_branch
        %109 = sbr.rel (%p106) target = $region24
      $region23: #{tpu_custom_call.1} parent=5 // pred_region
        %s110 = ssub.s32 %s13, 1
        %s111 = sand.u32 %s26, 1
        %s112 = scalar_lea.sflag [#allocation3], %s111
        %s113 = sand.u32 %s26, 1
        %s114 = smul.addr %s113, 16
        %s115 = scalar_lea.vmem [#allocation2], %s114
        // Predicated region
        $region25: #{tpu_custom_call.1} parent=23 // pred_check
          %p116 = pneg %p39
        $region26: #{tpu_custom_call.1} parent=23 // pred_check_branch
          %118 = sbr.rel (%p116) target = $region28
        $region27: #{tpu_custom_call.1} parent=23 // pred_region
          %120 = dma.done %s112, 256
        $region28: #{tpu_custom_call.1} parent=23 // pred_fallthru
          _
        %s121 = sand.u32 %s26, 1
        %s122 = scalar_lea.sflag [#allocation3], %s121
        %s123 = sand.u32 %s26, 1
        %s124 = smul.addr %s123, 16
        %s125 = scalar_lea.vmem [#allocation2], %s124
        %p126 = pneg %p39
        %p127 = pneg %p36
        %p128 = pneg %p65
        %p129 = pneg %p62
        %s130 = sand.u32 %s52, 1
        %s131 = scalar_lea.sflag [#allocation4], %s130
        %s132 = sand.u32 %s52, 1
        %s133 = smul.addr %s132, 8
        %s134 = scalar_lea.vmem [#allocation5], %s133
        %s135 = smul.u32 2, %s18
        %v136 = vld [vmem:[%s115] sm:$0xff]
        %v137 = vld [vmem:[%s115 + $0x8] sm:$0xff]
        %v138 = vadd.f32 %v136, %v137
        %139 = vadd.xlane.f32.xlu0 %v138
        %v140 = vpop.xlane.xlu0 %139
        %v141 = vmul.f32 %v136, %v136
        %v142 = vmul.f32 %v137, %v137
        %v143 = vadd.f32 %v141, %v142
        %144 = vadd.xlane.f32.xlu0 %v143
        %v145 = vpop.xlane.xlu0 %144
        %v146 = vlaneseq
        %v147 = vand.u32 %v146, 127
        %vm148 = vcmp.eq.s32.totalorder %v147, 0
        %vm149 = vcmp.eq.s32.totalorder %v147, 1
        %v150 = vsel %vm149, %v145, 0.0
        %v151 = vsel %vm148, %v140, %v150
        %152 = vst [vmem:[%s134] sm:$0xff] %v151
        %s153 = sand.u32 %s52, 1
        %s154 = scalar_lea.sflag [#allocation4], %s153
        %s155 = sand.u32 %s52, 1
        %s156 = smul.addr %s155, 8
        %s157 = scalar_lea.vmem [#allocation5], %s156
        // Predicated region
        $region29: #{tpu_custom_call.1} parent=23 // pred_check
          %p158 = pneg %p62
        $region30: #{tpu_custom_call.1} parent=23 // pred_check_branch
          %160 = sbr.rel (%p158) target = $region32
        $region31: #{tpu_custom_call.1} parent=23 // pred_region
          %162 = vsyncadd %s154, 0
          %s163 = smul.addr %s18, 8
          %s164 = scalar_lea.hbm %s1, %s163
          %s166 = sshll.u32 %s157, 4
          %s167 = int_to_ptr.vmem [resolvable:$true] %s166
          %s168 = sshll.u32 %s164, 4
          %s169 = int_to_ptr.hbm [resolvable:$true] %s168
          %171 = dma.vmem_to_hbm [thread:$0]  %s167, 128, %s169, %s154
        $region32: #{tpu_custom_call.1} parent=23 // pred_fallthru
          _
      $region24: #{tpu_custom_call.1} parent=5 // pred_fallthru
        _
      %p172 = scmp.le.s32.totalorder 2, %s13
      // Predicated region
      $region33: #{tpu_custom_call.1} parent=5 // pred_check
        %p173 = pneg %p172
      $region34: #{tpu_custom_call.1} parent=5 // pred_check_branch
        %175 = sbr.rel (%p173) target = $region36
      $region35: #{tpu_custom_call.1} parent=5 // pred_region
        %s176 = ssub.s32 %s13, 2
        // Predicated region
        $region37: #{tpu_custom_call.1} parent=35 // pred_check
          %p177 = pneg %p68
        $region38: #{tpu_custom_call.1} parent=35 // pred_check_branch
          %179 = sbr.rel (%p177) target = $region40
        $region39: #{tpu_custom_call.1} parent=35 // pred_region
          %s180 = sand.u32 %s53, 1
          %s181 = scalar_lea.sflag [#allocation4], %s180
          %s182 = sand.u32 %s53, 1
          %s183 = smul.addr %s182, 8
          %s184 = scalar_lea.vmem [#allocation5], %s183
          %186 = dma.done %s181, 128
        $region40: #{tpu_custom_call.1} parent=35 // pred_fallthru
          _
      $region36: #{tpu_custom_call.1} parent=5 // pred_fallthru
        _
    $region6: #{tpu_custom_call.1} parent=1 // loop_footer
      %s17 = sadd.s32 1, %s13
    $region7: #{tpu_custom_call.1} parent=1 // loop_footer_branch
      %12 = sbr.rel target = $region3
    $region8: #{tpu_custom_call.1} parent=1 // loop_exit
      _
    %187 = vsyncpa [#allocation3], 1
    %s188 = scalar_lea.sflag [#allocation3], 1
    %189 = vsyncpa %s188, 1
    %190 = vsyncpa [#allocation4], 1
    %s191 = scalar_lea.sflag [#allocation4], 1
    %192 = vsyncpa %s191, 1

</llo_original>
